<compile_context>
chip_gen: v6e
topology: v6e:2x2x1
jax: 0.10.0
libtpu: 0.0.40
codegen_flags: <defaults>
</compile_context>

<pallas_src>
import jax
import jax.numpy as jnp
from jax.experimental import pallas as pl
from jax.experimental.pallas import tpu as pltpu

HIDDEN = 32
BN_EPS = 1e-5
TB_DEFAULT = 1024       # max rows per grid step
MIN_TILES = 4           # target >= this many grid steps (v7x megacore + DMA overlap)


def _round_up(a, m):
    return (a + m - 1) // m * m


def _decoder_kernel(x_ref, w1_ref, b1_ref, wl_ref, bl_ref, wm_ref, bm_ref,
                    out_ref, mem_ref):
    # (TB, in_size) @ (in_size, 32) on the MXU; bias + ReLU on the VPU (f32 accum).
    h = jnp.dot(x_ref[...], w1_ref[...], preferred_element_type=jnp.float32)
    h = jnp.maximum(h + b1_ref[...].astype(jnp.float32), 0.0)

    # BN affine already folded into the head weights/biases (eval mode).
    out_ref[...] = (jnp.dot(h, wl_ref[...], preferred_element_type=jnp.float32)
                    + bl_ref[...]).astype(out_ref.dtype)
    mem = jnp.dot(h, wm_ref[...], preferred_element_type=jnp.float32) + bm_ref[...]
    mem_ref[...] = jax.nn.sigmoid(mem).astype(mem_ref.dtype)


def decoder_forward(x, params, tb=TB_DEFAULT):
    """x: (B, in_size), f32 or bf16.  Returns ((out, out_mem), None) like the PyTorch module."""
    B, in_size = x.shape
    num_classes = params["wl"].shape[1]
    n_heads = num_classes + 1

    # ---- fold eval-mode BatchNorm affine into each head (exact) ------------------------
    # h_bn = relu_out * a + c  with  a = gamma*rsqrt(var+eps), c = beta - mean*a
    a = (params["gamma"] * jax.lax.rsqrt(params["rvar"] + BN_EPS)).astype(jnp.float32)
    c = (params["beta"] - params["rmean"] * a).astype(jnp.float32)
    wl_f = a.T * params["wl"]                       # (HIDDEN, num_classes)
    bl_f = params["bl"] + c @ params["wl"]          # (1, num_classes)
    wm_f = a.T * params["wm"]                       # (HIDDEN, 1)
    bm_f = params["bm"] + c @ params["wm"]          # (1, 1)

    # Stream x in its native dtype; keep layer-1 weights in the same dtype (tiny, resident).
    w1 = params["w1"].astype(x.dtype)
    b1 = params["b1"].astype(x.dtype)

    # ---- balanced batch tiling ----------------------------------------------------------
    row_align = 16 if x.dtype == jnp.bfloat16 else 8
    # Aim for at least MIN_TILES grid steps, but never shrink a tile below row_align rows.
    n_tiles = max(pl.cdiv(B, tb), min(MIN_TILES, pl.cdiv(B, row_align)))
    TB = _round_up(pl.cdiv(B, n_tiles), row_align)
    n_tiles = pl.cdiv(B, TB)
    B_pad = n_tiles * TB
    x_p = jnp.pad(x, ((0, B_pad - B), (0, 0))) if B_pad != B else x

    cost = pl.CostEstimate(
        flops=2 * B_pad * in_size * HIDDEN + 2 * B_pad * HIDDEN * n_heads,
        transcendentals=B_pad,                      # sigmoid on the membrane column only
        bytes_accessed=(B_pad * in_size * x.dtype.itemsize
                        + (in_size + 1) * HIDDEN * w1.dtype.itemsize
                        + 4 * (B_pad * n_heads + (HIDDEN + 1) * n_heads)),
    )

    # Explicit scoped-VMEM limit: covers double-buffered x/out tiles plus resident weights,
    # floored at 32 MiB and capped well under v7x's 64 MiB physical.
    vmem_est = (2 * TB * in_size * x.dtype.itemsize
                + 2 * TB * n_heads * 4
                + 2 * (in_size + 1) * HIDDEN * w1.dtype.itemsize
                + 2 * (HIDDEN + 1) * n_heads * 4)
    vmem_limit = int(min(max(2 * vmem_est, 32 << 20), 48 << 20))

    out, out_mem = pl.pallas_call(
        _decoder_kernel,
        out_shape=(jax.ShapeDtypeStruct((B_pad, num_classes), jnp.float32),
                   jax.ShapeDtypeStruct((B_pad, 1), jnp.float32)),
        grid_spec=pltpu.PrefetchScalarGridSpec(
            num_scalar_prefetch=0,
            grid=(n_tiles,),
            in_specs=[
                pl.BlockSpec((TB, in_size), lambda i: (i, 0)),          # streamed per tile
                pl.BlockSpec((in_size, HIDDEN), lambda i: (0, 0)),      # resident weights
                pl.BlockSpec((1, HIDDEN), lambda i: (0, 0)),
                pl.BlockSpec((HIDDEN, num_classes), lambda i: (0, 0)),
                pl.BlockSpec((1, num_classes), lambda i: (0, 0)),
                pl.BlockSpec((HIDDEN, 1), lambda i: (0, 0)),
                pl.BlockSpec((1, 1), lambda i: (0, 0)),
            ],
            out_specs=[
                pl.BlockSpec((TB, num_classes), lambda i: (i, 0)),      # unpadded columns
                pl.BlockSpec((TB, 1), lambda i: (i, 0)),
            ],
        ),
        compiler_params=pltpu.CompilerParams(
            dimension_semantics=("parallel",),       # megacore-shard batch tiles on v7x
            vmem_limit_bytes=vmem_limit,
        ),
        cost_estimate=cost,
    )(x_p, w1, b1, wl_f, bl_f, wm_f, bm_f)

    if B_pad != B:
        out, out_mem = out[:B], out_mem[:B]
    return (out, out_mem), None


def init_params(key, in_size, num_classes):
    """Deterministic synthetic init matching nn.Linear / nn.BatchNorm1d shapes.
    Linear weights are stored transposed vs. PyTorch: (in_features, out_features)."""
    ks = jax.random.split(key, 6)
    scale1 = 1.0 / jnp.sqrt(in_size)
    scaleh = 1.0 / jnp.sqrt(HIDDEN)
    return {
        # nn.Linear(in_size, 32)
        "w1": jax.random.uniform(ks[0], (in_size, HIDDEN), jnp.float32, -scale1, scale1),
        "b1": jax.random.uniform(ks[1], (1, HIDDEN), jnp.float32, -scale1, scale1),
        # nn.BatchNorm1d(32)
        "gamma": jnp.ones((1, HIDDEN), jnp.float32),
        "beta": jnp.zeros((1, HIDDEN), jnp.float32),
        "rmean": jnp.zeros((1, HIDDEN), jnp.float32),
        "rvar": jnp.ones((1, HIDDEN), jnp.float32),
        # nn.Linear(32, num_classes)
        "wl": jax.random.uniform(ks[2], (HIDDEN, num_classes), jnp.float32, -scaleh, scaleh),
        "bl": jax.random.uniform(ks[3], (1, num_classes), jnp.float32, -scaleh, scaleh),
        # nn.Linear(32, 1)
        "wm": jax.random.uniform(ks[4], (HIDDEN, 1), jnp.float32, -scaleh, scaleh),
        "bm": jax.random.uniform(ks[5], (1, 1), jnp.float32, -scaleh, scaleh),
    }


def _reference(x, p):
    h = jnp.maximum(x @ p["w1"] + p["b1"], 0.0)
    h = (h - p["rmean"]) * jax.lax.rsqrt(p["rvar"] + BN_EPS) * p["gamma"] + p["beta"]
    return h @ p["wl"] + p["bl"], jax.nn.sigmoid(h @ p["wm"] + p["bm"])


if __name__ == "__main__":
    B, IN_SIZE, NUM_CLASSES = 8, 64, 10

    key = jax.random.PRNGKey(0)
    kx, kp = jax.random.split(key)
    x = jax.random.normal(kx, (B, IN_SIZE), jnp.float32)
    params = init_params(kp, IN_SIZE, NUM_CLASSES)

    # f32 path (bit-faithful to the eval-mode PyTorch forward).
    (out, out_mem), _ = decoder_forward(x, params)
    jax.block_until_ready((out, out_mem))
    ref_out, ref_mem = _reference(x, params)
    assert out.shape == (B, NUM_CLASSES) and out_mem.shape == (B, 1)
    assert jnp.allclose(out, ref_out, atol=1e-5, rtol=1e-5)
    assert jnp.allclose(out_mem, ref_mem, atol=1e-5, rtol=1e-5)

    # bf16-streaming path (halves the dominant HBM read traffic); looser tolerance.
    x_bf = x.astype(jnp.bfloat16)
    (out_b, mem_b), _ = decoder_forward(x_bf, params)
    jax.block_until_ready((out_b, mem_b))
    ref_out_b, ref_mem_b = _reference(x_bf.astype(jnp.float32), params)
    assert out_b.shape == (B, NUM_CLASSES) and mem_b.shape == (B, 1)
    assert jnp.allclose(out_b, ref_out_b, atol=3e-2, rtol=3e-2)
    assert jnp.allclose(mem_b, ref_mem_b, atol=3e-2, rtol=3e-2)

    print("KERNEL_OK")
</pallas_src>

<mosaic_0001>
module attributes {stable_mosaic.version = 11 : i64} {
  func.func @_decoder_kernel(%arg0: i32, %arg1: memref<8x64xf32, #tpu.memory_space<vmem>>, %arg2: memref<64x32xf32, #tpu.memory_space<vmem>>, %arg3: memref<1x32xf32, #tpu.memory_space<vmem>>, %arg4: memref<32x10xf32, #tpu.memory_space<vmem>>, %arg5: memref<1x10xf32, #tpu.memory_space<vmem>>, %arg6: memref<32x1xf32, #tpu.memory_space<vmem>>, %arg7: memref<1x1xf32, #tpu.memory_space<vmem>>, %arg8: memref<8x10xf32, #tpu.memory_space<vmem>>, %arg9: memref<8x1xf32, #tpu.memory_space<vmem>>) attributes {dimension_semantics = [#tpu.dimension_semantics<parallel>], iteration_bounds = array<i64: 1>, scalar_prefetch = 0 : i64, scratch_operands = 0 : i64, tpu.core_type = #tpu.core_type<tc>, window_params = [{transform_indices = @transform_0, window_bounds = array<i64: 8, 64>}, {pipeline_mode = #tpu.pipeline_mode<synchronous>, transform_indices = @transform_1, window_bounds = array<i64: 64, 32>}, {pipeline_mode = #tpu.pipeline_mode<synchronous>, transform_indices = @transform_2, window_bounds = array<i64: 1, 32>}, {pipeline_mode = #tpu.pipeline_mode<synchronous>, transform_indices = @transform_3, window_bounds = array<i64: 32, 10>}, {pipeline_mode = #tpu.pipeline_mode<synchronous>, transform_indices = @transform_4, window_bounds = array<i64: 1, 10>}, {pipeline_mode = #tpu.pipeline_mode<synchronous>, transform_indices = @transform_5, window_bounds = array<i64: 32, 1>}, {pipeline_mode = #tpu.pipeline_mode<synchronous>, transform_indices = @transform_6, window_bounds = array<i64: 1, 1>}, {transform_indices = @transform_7, window_bounds = array<i64: 8, 10>}, {transform_indices = @transform_8, window_bounds = array<i64: 8, 1>}]} {
    %c0 = arith.constant 0 : index
    %c0_0 = arith.constant 0 : index
    %0 = vector.load %arg1[%c0, %c0_0] : memref<8x64xf32, #tpu.memory_space<vmem>>, vector<8x64xf32>
    %c0_1 = arith.constant 0 : index
    %c0_2 = arith.constant 0 : index
    %1 = vector.load %arg2[%c0_1, %c0_2] : memref<64x32xf32, #tpu.memory_space<vmem>>, vector<64x32xf32>
    %cst = arith.constant dense<0.000000e+00> : vector<8x32xf32>
    %2 = tpu.matmul %0, %1, %cst {dimension_numbers = #tpu.dot_dimension_numbers<[1], [0], [0], [1], [0, 0, 1, 1], [], []>} : vector<8x64xf32>, vector<64x32xf32>, vector<8x32xf32> -> vector<8x32xf32>
    %c0_3 = arith.constant 0 : index
    %c0_4 = arith.constant 0 : index
    %3 = vector.load %arg3[%c0_3, %c0_4] : memref<1x32xf32, #tpu.memory_space<vmem>>, vector<1x32xf32>
    %4 = vector.broadcast %3 : vector<1x32xf32> to vector<8x32xf32>
    %5 = arith.addf %2, %4 : vector<8x32xf32>
    %cst_5 = arith.constant 0.000000e+00 : f32
    %6 = vector.broadcast %cst_5 : f32 to vector<8x32xf32>
    %7 = arith.maximumf %5, %6 : vector<8x32xf32>
    %c0_6 = arith.constant 0 : index
    %c0_7 = arith.constant 0 : index
    %8 = vector.load %arg4[%c0_6, %c0_7] : memref<32x10xf32, #tpu.memory_space<vmem>>, vector<32x10xf32>
    %cst_8 = arith.constant dense<0.000000e+00> : vector<8x10xf32>
    %9 = tpu.matmul %7, %8, %cst_8 {dimension_numbers = #tpu.dot_dimension_numbers<[1], [0], [0], [1], [0, 0, 1, 1], [], []>} : vector<8x32xf32>, vector<32x10xf32>, vector<8x10xf32> -> vector<8x10xf32>
    %c0_9 = arith.constant 0 : index
    %c0_10 = arith.constant 0 : index
    %10 = vector.load %arg5[%c0_9, %c0_10] : memref<1x10xf32, #tpu.memory_space<vmem>>, vector<1x10xf32>
    %11 = vector.broadcast %10 : vector<1x10xf32> to vector<8x10xf32>
    %12 = arith.addf %9, %11 : vector<8x10xf32>
    %c0_11 = arith.constant 0 : index
    %c0_12 = arith.constant 0 : index
    %13 = vector.load %arg8[%c0_11, %c0_12] : memref<8x10xf32, #tpu.memory_space<vmem>>, vector<8x10xf32>
    tpu.vector_store %arg8[%c0_11, %c0_12], %12 {strides = array<i32>} : memref<8x10xf32, #tpu.memory_space<vmem>>, vector<8x10xf32>,
    %c0_13 = arith.constant 0 : index
    %c0_14 = arith.constant 0 : index
    %14 = vector.load %arg6[%c0_13, %c0_14] : memref<32x1xf32, #tpu.memory_space<vmem>>, vector<32x1xf32>
    %cst_15 = arith.constant dense<0.000000e+00> : vector<8x1xf32>
    %15 = tpu.matmul %7, %14, %cst_15 {dimension_numbers = #tpu.dot_dimension_numbers<[1], [0], [0], [1], [0, 0, 1, 1], [], []>} : vector<8x32xf32>, vector<32x1xf32>, vector<8x1xf32> -> vector<8x1xf32>
    %c0_16 = arith.constant 0 : index
    %c0_17 = arith.constant 0 : index
    %16 = vector.load %arg7[%c0_16, %c0_17] : memref<1x1xf32, #tpu.memory_space<vmem>>, vector<1x1xf32>
    %17 = vector.broadcast %16 : vector<1x1xf32> to vector<8x1xf32>
    %18 = arith.addf %15, %17 : vector<8x1xf32>
    %19 = arith.negf %18 : vector<8x1xf32>
    %20 = math.exp %19 : vector<8x1xf32>
    %cst_18 = arith.constant 1.000000e+00 : f32
    %21 = vector.broadcast %cst_18 : f32 to vector<8x1xf32>
    %22 = arith.addf %21, %20 : vector<8x1xf32>
    %23 = arith.divf %21, %22 : vector<8x1xf32>
    %c0_19 = arith.constant 0 : index
    %c0_20 = arith.constant 0 : index
    %24 = vector.load %arg9[%c0_19, %c0_20] : memref<8x1xf32, #tpu.memory_space<vmem>>, vector<8x1xf32>
    tpu.vector_store %arg9[%c0_19, %c0_20], %23 {strides = array<i32>} : memref<8x1xf32, #tpu.memory_space<vmem>>, vector<8x1xf32>,
    return
  }
  func.func @transform_0(%arg0: i32) -> (i32, i32) {
    %c0_i32 = arith.constant 0 : i32
    %c0_i32_0 = arith.constant 0 : i32
    return %arg0, %c0_i32 : i32, i32
  }
  func.func @transform_1(%arg0: i32) -> (i32, i32) {
    %c0_i32 = arith.constant 0 : i32
    %c0_i32_0 = arith.constant 0 : i32
    %c0_i32_1 = arith.constant 0 : i32
    return %c0_i32, %c0_i32_0 : i32, i32
  }
  func.func @transform_2(%arg0: i32) -> (i32, i32) {
    %c0_i32 = arith.constant 0 : i32
    %c0_i32_0 = arith.constant 0 : i32
    %c0_i32_1 = arith.constant 0 : i32
    return %c0_i32, %c0_i32_0 : i32, i32
  }
  func.func @transform_3(%arg0: i32) -> (i32, i32) {
    %c0_i32 = arith.constant 0 : i32
    %c0_i32_0 = arith.constant 0 : i32
    %c0_i32_1 = arith.constant 0 : i32
    return %c0_i32, %c0_i32_0 : i32, i32
  }
  func.func @transform_4(%arg0: i32) -> (i32, i32) {
    %c0_i32 = arith.constant 0 : i32
    %c0_i32_0 = arith.constant 0 : i32
    %c0_i32_1 = arith.constant 0 : i32
    return %c0_i32, %c0_i32_0 : i32, i32
  }
  func.func @transform_5(%arg0: i32) -> (i32, i32) {
    %c0_i32 = arith.constant 0 : i32
    %c0_i32_0 = arith.constant 0 : i32
    %c0_i32_1 = arith.constant 0 : i32
    return %c0_i32, %c0_i32_0 : i32, i32
  }
  func.func @transform_6(%arg0: i32) -> (i32, i32) {
    %c0_i32 = arith.constant 0 : i32
    %c0_i32_0 = arith.constant 0 : i32
    %c0_i32_1 = arith.constant 0 : i32
    return %c0_i32, %c0_i32_0 : i32, i32
  }
  func.func @transform_7(%arg0: i32) -> (i32, i32) {
    %c0_i32 = arith.constant 0 : i32
    %c0_i32_0 = arith.constant 0 : i32
    return %arg0, %c0_i32 : i32, i32
  }
  func.func @transform_8(%arg0: i32) -> (i32, i32) {
    %c0_i32 = arith.constant 0 : i32
    %c0_i32_0 = arith.constant 0 : i32
    return %arg0, %c0_i32 : i32, i32
  }
}

</mosaic_0001>

<llo_original>
// kernel: tpu_custom_call.1
$region0: #{tpu_custom_call.1}
  #allocation0 [shape = 'u32[]', space=smem, size = 0x4, offset = 0x4, fixed_abs, tag = 'smem constant byte address 0x4 - core index']
  #allocation1 [shape = 'u32[144,128]{1,0:T(1,128)}', space=vmem, size = 0x12000, scoped, tag = 'internal scratch']
  #allocation2 [shape = 'f32[1,1]{1,0:T(1,128)S(1)}', space=vmem, size = 0x200, scoped, tag = 'scoped memory for tpu_custom_call.1']
  %s0 = inlined_call_operand.vmem [shape: f32[8,64], index: 0, kind: input, shape index: {}]
  %s1 = inlined_call_operand.vmem [shape: f32[64,32], index: 1, kind: input, shape index: {}]
  %s2 = inlined_call_operand.vmem [shape: f32[1,32], index: 2, kind: input, shape index: {}]
  %s3 = inlined_call_operand.vmem [shape: f32[32,10], index: 3, kind: input, shape index: {}]
  %s4 = inlined_call_operand.vmem [shape: f32[1,10], index: 4, kind: input, shape index: {}]
  %s5 = inlined_call_operand.vmem [shape: f32[32,1], index: 5, kind: input, shape index: {}]
  %s6 = inlined_call_operand.<no memory space> [shape: f32[1,1], index: 6, kind: input, shape index: {}]
  %s7 = inlined_call_operand.hbm [shape: f32[8,10], index: 7, kind: output, shape index: {0}]
  %s8 = inlined_call_operand.vmem [shape: f32[8,1], index: 8, kind: output, shape index: {1}]
  %9 = xla_tuple %s7, %s8
  %s10 = sld [smem:[#allocation0]]
  $region46: #{tpu_custom_call.1} parent=0
    _
  %s12 = ssub.s32 1, %s10
  %s13 = scalar_select 0, %s12, %s10
  %v14 = vstv %s6
  %15 = vst [vmem:[#allocation2] sm:$0x1] %v14
  $region1: #{tpu_custom_call.1} parent=0
    #allocation3 [shape = 'u8[4096]{0}', space=vmem, size = 0x1000, scoped, tag = 'output window, operand 0, single buffered']
    #allocation4 [shape = 's32[1]{0}', space=sflag, size = 0x4, scoped, tag = 'scoped memory for tpu_custom_call.1']
    %16 = vsyncpa [#allocation4], 0
    // Predicated region
    $region2: #{tpu_custom_call.1} parent=1 // pred_check
      _
    $region3: #{tpu_custom_call.1} parent=1 // pred_check_branch
      %18 = sbr.rel (0) target = $region5
    $region4: #{tpu_custom_call.1} parent=1 // pred_region
      _
    $region5: #{tpu_custom_call.1} parent=1 // pred_fallthru
      _
    // Predicated region
    $region6: #{tpu_custom_call.1} parent=1 // pred_check
      _
    $region7: #{tpu_custom_call.1} parent=1 // pred_check_branch
      %20 = sbr.rel (0) target = $region9
    $region8: #{tpu_custom_call.1} parent=1 // pred_region
      _
    $region9: #{tpu_custom_call.1} parent=1 // pred_fallthru
      _
    // Predicated region
    $region10: #{tpu_custom_call.1} parent=1 // pred_check
      _
    $region11: #{tpu_custom_call.1} parent=1 // pred_check_branch
      %22 = sbr.rel (0) target = $region13
    $region12: #{tpu_custom_call.1} parent=1 // pred_region
      _
    $region13: #{tpu_custom_call.1} parent=1 // pred_fallthru
      _
    // Predicated region
    $region14: #{tpu_custom_call.1} parent=1 // pred_check
      _
    $region15: #{tpu_custom_call.1} parent=1 // pred_check_branch
      %24 = sbr.rel (0) target = $region17
    $region16: #{tpu_custom_call.1} parent=1 // pred_region
      _
    $region17: #{tpu_custom_call.1} parent=1 // pred_fallthru
      _
    // Predicated region
    $region18: #{tpu_custom_call.1} parent=1 // pred_check
      _
    $region19: #{tpu_custom_call.1} parent=1 // pred_check_branch
      %26 = sbr.rel (0) target = $region21
    $region20: #{tpu_custom_call.1} parent=1 // pred_region
      _
    $region21: #{tpu_custom_call.1} parent=1 // pred_fallthru
      _
    // Predicated region
    $region22: #{tpu_custom_call.1} parent=1 // pred_check
      _
    $region23: #{tpu_custom_call.1} parent=1 // pred_check_branch
      %28 = sbr.rel (0) target = $region25
    $region24: #{tpu_custom_call.1} parent=1 // pred_region
      _
    $region25: #{tpu_custom_call.1} parent=1 // pred_fallthru
      _
    // Predicated region
    $region26: #{tpu_custom_call.1} parent=1 // pred_check
      _
    $region27: #{tpu_custom_call.1} parent=1 // pred_check_branch
      %30 = sbr.rel (0) target = $region29
    $region28: #{tpu_custom_call.1} parent=1 // pred_region
      _
    $region29: #{tpu_custom_call.1} parent=1 // pred_fallthru
      _
    %v31 = vld [vmem:[%s0] sm:$0xff]
    %v32 = vld [vmem:[%s1] sm:$0xff]
    %v33 = vld [vmem:[%s1 + $0x8] sm:$0xff]
    %v34 = vld [vmem:[%s1 + $0x10] sm:$0xff]
    %v35 = vld [vmem:[%s1 + $0x18] sm:$0xff]
    %v36 = vld [vmem:[%s1 + $0x20] sm:$0xff]
    %v37 = vld [vmem:[%s1 + $0x28] sm:$0xff]
    %v38 = vld [vmem:[%s1 + $0x30] sm:$0xff]
    %v39 = vld [vmem:[%s1 + $0x38] sm:$0xff]
    %v40 = vld [vmem:[%s2] sm:$0x1]
    %v42 = vlaneseq
    %v43 = vshrl.u32 %v42, 7
    %v44 = vsub.s32 0, %v43
    %v45 = vrot.slane %v40, %v44
    %vm47 = vcmask 523264
    %v49 = vsel %vm47, %v31, 0
    %51 = vmatprep.subr.mxu0 0.0
    %52 = vmatpush1.msra.mxu0 0.0
    %53 = vmatprep.subr.mxu0 0.0
    %54 = vmatpush1.msra.mxu0 0.0
    %55 = vmatprep.subr.mxu0 0.0
    %56 = vmatpush1.msra.mxu0 0.0
    %57 = vmatprep.subr.mxu0 0.0
    %58 = vmatpush1.msra.mxu0 0.0
    %59 = vmatprep.subr.mxu0 0.0
    %60 = vmatpush1.msra.mxu0 0.0
    %61 = vmatprep.subr.mxu0 0.0
    %62 = vmatpush1.msra.mxu0 0.0
    %63 = vmatprep.subr.mxu0 0.0
    %64 = vmatpush1.msra.mxu0 0.0
    %65 = vmatprep.subr.mxu0 0.0
    %66 = vmatpush1.msra.mxu0 0.0
    %67 = vmatprep.subr.mxu0 0.0
    %68 = vmatpush1.msra.mxu0 %v39
    %69 = vmatprep.subr.mxu0 0.0
    %70 = vmatpush1.msra.mxu0 %v38
    %71 = vmatprep.subr.mxu0 0.0
    %72 = vmatpush1.msra.mxu0 %v37
    %73 = vmatprep.subr.mxu0 0.0
    %74 = vmatpush1.msra.mxu0 %v36
    %75 = vmatprep.subr.mxu0 0.0
    %76 = vmatpush1.msra.mxu0 %v35
    %77 = vmatprep.subr.mxu0 0.0
    %78 = vmatpush1.msra.mxu0 %v34
    %79 = vmatprep.subr.mxu0 0.0
    %80 = vmatpush1.msra.mxu0 %v33
    %81 = vmatprep.subr.mxu0 0.0
    %82 = vmatpush1.msra.mxu0 %v32
    %83 = vmatprep.subr.mxu0 0.0
    %84 = vmatpush2.msra.mxu0 0.0
    %85 = vmatprep.subr.mxu0 0.0
    %86 = vmatpush2.msra.mxu0 0.0
    %87 = vmatprep.subr.mxu0 0.0
    %88 = vmatpush2.msra.mxu0 0.0
    %89 = vmatprep.subr.mxu0 0.0
    %90 = vmatpush2.msra.mxu0 0.0
    %91 = vmatprep.subr.mxu0 0.0
    %92 = vmatpush2.msra.mxu0 0.0
    %93 = vmatprep.subr.mxu0 0.0
    %94 = vmatpush2.msra.mxu0 0.0
    %95 = vmatprep.subr.mxu0 0.0
    %96 = vmatpush2.msra.mxu0 0.0
    %97 = vmatprep.subr.mxu0 0.0
    %98 = vmatpush2.msra.mxu0 0.0
    %99 = vmatprep.subr.mxu0 0.0
    %100 = vmatpush2.msra.mxu0 0.0
    %101 = vmatprep.subr.mxu0 0.0
    %102 = vmatpush2.msra.mxu0 0.0
    %103 = vmatprep.subr.mxu0 0.0
    %104 = vmatpush2.msra.mxu0 0.0
    %105 = vmatprep.subr.mxu0 0.0
    %106 = vmatpush2.msra.mxu0 0.0
    %107 = vmatprep.subr.mxu0 0.0
    %108 = vmatpush2.msra.mxu0 0.0
    %109 = vmatprep.subr.mxu0 0.0
    %110 = vmatpush2.msra.mxu0 0.0
    %111 = vmatprep.subr.mxu0 0.0
    %112 = vmatpush2.msra.mxu0 0.0
    %113 = vmatprep.subr.mxu0 0.0
    %114 = vmatpush2.msra.mxu0 0.0
    %115 = vmatprep.mubr.f32.mxu0 0.0
    %116 = vmatmul.mubr.f32.gmra.mxu0 %v49
    %v117 = vpop.f32.mrf.mxu0
    %v118 = vadd.f32 %v45, %v117
    %v119 = vpop.f32.mrf.mxu0
    %120 = vdwg.mxu0
    %v121 = vmax.f32 %v118, 0.0
    %v122 = vld [vmem:[%s3] sm:$0xff]
    %v123 = vld [vmem:[%s3 + $0x8] sm:$0xff]
    %v124 = vld [vmem:[%s3 + $0x10] sm:$0xff]
    %v125 = vld [vmem:[%s3 + $0x18] sm:$0xff]
    %v126 = vld [vmem:[%s4] sm:$0x1]
    %v128 = vlaneseq
    %v129 = vshrl.u32 %v128, 7
    %v130 = vsub.s32 0, %v129
    %v131 = vrot.slane %v126, %v130
    %vm133 = vcmask 261120
    %v135 = vsel %vm133, %v121, 0
    %137 = vmatprep.subr.mxu0 0.0
    %138 = vmatpush1.msra.mxu0 0.0
    %139 = vmatprep.subr.mxu0 0.0
    %140 = vmatpush1.msra.mxu0 0.0
    %141 = vmatprep.subr.mxu0 0.0
    %142 = vmatpush1.msra.mxu0 0.0
    %143 = vmatprep.subr.mxu0 0.0
    %144 = vmatpush1.msra.mxu0 0.0
    %145 = vmatprep.subr.mxu0 0.0
    %146 = vmatpush1.msra.mxu0 0.0
    %147 = vmatprep.subr.mxu0 0.0
    %148 = vmatpush1.msra.mxu0 0.0
    %149 = vmatprep.subr.mxu0 0.0
    %150 = vmatpush1.msra.mxu0 0.0
    %151 = vmatprep.subr.mxu0 0.0
    %152 = vmatpush1.msra.mxu0 0.0
    %153 = vmatprep.subr.mxu0 0.0
    %154 = vmatpush1.msra.mxu0 0.0
    %155 = vmatprep.subr.mxu0 0.0
    %156 = vmatpush1.msra.mxu0 0.0
    %157 = vmatprep.subr.mxu0 0.0
    %158 = vmatpush1.msra.mxu0 0.0
    %159 = vmatprep.subr.mxu0 0.0
    %160 = vmatpush1.msra.mxu0 0.0
    %161 = vmatprep.subr.mxu0 0.0
    %162 = vmatpush1.msra.mxu0 %v125
    %163 = vmatprep.subr.mxu0 0.0
    %164 = vmatpush1.msra.mxu0 %v124
    %165 = vmatprep.subr.mxu0 0.0
    %166 = vmatpush1.msra.mxu0 %v123
    %167 = vmatprep.subr.mxu0 0.0
    %168 = vmatpush1.msra.mxu0 %v122
    %169 = vmatprep.subr.mxu0 0.0
    %170 = vmatpush2.msra.mxu0 0.0
    %171 = vmatprep.subr.mxu0 0.0
    %172 = vmatpush2.msra.mxu0 0.0
    %173 = vmatprep.subr.mxu0 0.0
    %174 = vmatpush2.msra.mxu0 0.0
    %175 = vmatprep.subr.mxu0 0.0
    %176 = vmatpush2.msra.mxu0 0.0
    %177 = vmatprep.subr.mxu0 0.0
    %178 = vmatpush2.msra.mxu0 0.0
    %179 = vmatprep.subr.mxu0 0.0
    %180 = vmatpush2.msra.mxu0 0.0
    %181 = vmatprep.subr.mxu0 0.0
    %182 = vmatpush2.msra.mxu0 0.0
    %183 = vmatprep.subr.mxu0 0.0
    %184 = vmatpush2.msra.mxu0 0.0
    %185 = vmatprep.subr.mxu0 0.0
    %186 = vmatpush2.msra.mxu0 0.0
    %187 = vmatprep.subr.mxu0 0.0
    %188 = vmatpush2.msra.mxu0 0.0
    %189 = vmatprep.subr.mxu0 0.0
    %190 = vmatpush2.msra.mxu0 0.0
    %191 = vmatprep.subr.mxu0 0.0
    %192 = vmatpush2.msra.mxu0 0.0
    %193 = vmatprep.subr.mxu0 0.0
    %194 = vmatpush2.msra.mxu0 0.0
    %195 = vmatprep.subr.mxu0 0.0
    %196 = vmatpush2.msra.mxu0 0.0
    %197 = vmatprep.subr.mxu0 0.0
    %198 = vmatpush2.msra.mxu0 0.0
    %199 = vmatprep.subr.mxu0 0.0
    %200 = vmatpush2.msra.mxu0 0.0
    %201 = vmatprep.mubr.f32.mxu0 0.0
    %202 = vmatmul.mubr.f32.gmra.mxu0 %v135
    %v203 = vpop.f32.mrf.mxu0
    %v204 = vadd.f32 %v131, %v203
    %v205 = vpop.f32.mrf.mxu0
    %206 = vdwg.mxu0
    %vm207 = vcmask 80896
    %208 = vst.msk [vmem:[#allocation3] sm:$0xff] %vm207, %v204
    %v209 = vld [vmem:[%s5] sm:$0xff]
    %v210 = vld [vmem:[%s5 + $0x8] sm:$0xff]
    %v211 = vld [vmem:[%s5 + $0x10] sm:$0xff]
    %v212 = vld [vmem:[%s5 + $0x18] sm:$0xff]
    %v213 = vld [vmem:[#allocation2] sm:$0x1]
    %v215 = vlaneseq
    %v216 = vshrl.u32 %v215, 7
    %v217 = vsub.s32 0, %v216
    %v218 = vrot.slane %v213, %v217
    %220 = vmatprep.subr.mxu0 0.0
    %221 = vmatpush1.msra.mxu0 0.0
    %222 = vmatprep.subr.mxu0 0.0
    %223 = vmatpush1.msra.mxu0 0.0
    %224 = vmatprep.subr.mxu0 0.0
    %225 = vmatpush1.msra.mxu0 0.0
    %226 = vmatprep.subr.mxu0 0.0
    %227 = vmatpush1.msra.mxu0 0.0
    %228 = vmatprep.subr.mxu0 0.0
    %229 = vmatpush1.msra.mxu0 0.0
    %230 = vmatprep.subr.mxu0 0.0
    %231 = vmatpush1.msra.mxu0 0.0
    %232 = vmatprep.subr.mxu0 0.0
    %233 = vmatpush1.msra.mxu0 0.0
    %234 = vmatprep.subr.mxu0 0.0
    %235 = vmatpush1.msra.mxu0 0.0
    %236 = vmatprep.subr.mxu0 0.0
    %237 = vmatpush1.msra.mxu0 0.0
    %238 = vmatprep.subr.mxu0 0.0
    %239 = vmatpush1.msra.mxu0 0.0
    %240 = vmatprep.subr.mxu0 0.0
    %241 = vmatpush1.msra.mxu0 0.0
    %242 = vmatprep.subr.mxu0 0.0
    %243 = vmatpush1.msra.mxu0 0.0
    %244 = vmatprep.subr.mxu0 0.0
    %245 = vmatpush1.msra.mxu0 %v212
    %246 = vmatprep.subr.mxu0 0.0
    %247 = vmatpush1.msra.mxu0 %v211
    %248 = vmatprep.subr.mxu0 0.0
    %249 = vmatpush1.msra.mxu0 %v210
    %250 = vmatprep.subr.mxu0 0.0
    %251 = vmatpush1.msra.mxu0 %v209
    %252 = vmatprep.subr.mxu0 0.0
    %253 = vmatpush2.msra.mxu0 0.0
    %254 = vmatprep.subr.mxu0 0.0
    %255 = vmatpush2.msra.mxu0 0.0
    %256 = vmatprep.subr.mxu0 0.0
    %257 = vmatpush2.msra.mxu0 0.0
    %258 = vmatprep.subr.mxu0 0.0
    %259 = vmatpush2.msra.mxu0 0.0
    %260 = vmatprep.subr.mxu0 0.0
    %261 = vmatpush2.msra.mxu0 0.0
    %262 = vmatprep.subr.mxu0 0.0
    %263 = vmatpush2.msra.mxu0 0.0
    %264 = vmatprep.subr.mxu0 0.0
    %265 = vmatpush2.msra.mxu0 0.0
    %266 = vmatprep.subr.mxu0 0.0
    %267 = vmatpush2.msra.mxu0 0.0
    %268 = vmatprep.subr.mxu0 0.0
    %269 = vmatpush2.msra.mxu0 0.0
    %270 = vmatprep.subr.mxu0 0.0
    %271 = vmatpush2.msra.mxu0 0.0
    %272 = vmatprep.subr.mxu0 0.0
    %273 = vmatpush2.msra.mxu0 0.0
    %274 = vmatprep.subr.mxu0 0.0
    %275 = vmatpush2.msra.mxu0 0.0
    %276 = vmatprep.subr.mxu0 0.0
    %277 = vmatpush2.msra.mxu0 0.0
    %278 = vmatprep.subr.mxu0 0.0
    %279 = vmatpush2.msra.mxu0 0.0
    %280 = vmatprep.subr.mxu0 0.0
    %281 = vmatpush2.msra.mxu0 0.0
    %282 = vmatprep.subr.mxu0 0.0
    %283 = vmatpush2.msra.mxu0 0.0
    %284 = vmatprep.mubr.f32.mxu0 0.0
    %285 = vmatmul.mubr.f32.gmra.mxu0 %v135
    %v286 = vpop.f32.mrf.mxu0
    %v287 = vadd.f32 %v218, %v286
    %v288 = vpop.f32.mrf.mxu0
    %289 = vdwg.mxu0
    %v290 = vxor.u32 %v287, 2147483648
    %v291 = vmul.f32 %v290, 1.442695
    %v292 = vpow.pop %v291
    %v293 = vadd.f32 %v292, 1.0
    %v294 = vrcp.pop %v293
    %v295 = vmul.f32 1.0, %v294
    %vm296 = vcmask 7168
    %297 = vst.msk [vmem:[%s8] sm:$0xff] %vm296, %v295
    // Predicated region
    $region30: #{tpu_custom_call.1} parent=1 // pred_check
      _
    $region31: #{tpu_custom_call.1} parent=1 // pred_check_branch
      %299 = sbr.rel (0) target = $region33
    $region32: #{tpu_custom_call.1} parent=1 // pred_region
      %s301 = ssub.s32 128, 128
      %302 = vsyncadd [#allocation4], %s301
      %s304 = sshll.u32 [#allocation3], 4
      %s305 = int_to_ptr.vmem [resolvable:$true] %s304
      %307 = dma.vmem_to_hbm [thread:$0]  %s305, 128, %s7, [#allocation4]
    $region33: #{tpu_custom_call.1} parent=1 // pred_fallthru
      _
    // Predicated region
    $region34: #{tpu_custom_call.1} parent=1 // pred_check
      _
    $region35: #{tpu_custom_call.1} parent=1 // pred_check_branch
      %309 = sbr.rel (0) target = $region37
    $region36: #{tpu_custom_call.1} parent=1 // pred_region
      _
    $region37: #{tpu_custom_call.1} parent=1 // pred_fallthru
      _
    // Predicated region
    $region38: #{tpu_custom_call.1} parent=1 // pred_check
      _
    $region39: #{tpu_custom_call.1} parent=1 // pred_check_branch
      %311 = sbr.rel (0) target = $region41
    $region40: #{tpu_custom_call.1} parent=1 // pred_region
      %312 = dma.done [#allocation4], 128
    $region41: #{tpu_custom_call.1} parent=1 // pred_fallthru
      _
    // Predicated region
    $region42: #{tpu_custom_call.1} parent=1 // pred_check
      _
    $region43: #{tpu_custom_call.1} parent=1 // pred_check_branch
      %314 = sbr.rel (0) target = $region45
    $region44: #{tpu_custom_call.1} parent=1 // pred_region
      _
    $region45: #{tpu_custom_call.1} parent=1 // pred_fallthru
      _
    %315 = vsyncpa [#allocation4], 1

</llo_original>
